<compile_context>
chip_gen: v7x
topology: tpu7x:2x2x1
jax: 0.10.0
libtpu: 0.0.40
codegen_flags: <defaults>
</compile_context>

<pallas_src>
import functools

import jax
import jax.numpy as jnp
from jax.experimental import pallas as pl
from jax.experimental.pallas import tpu as pltpu


# ---------------------------------------------------------------------------
# Generation-aware sizing.
# ---------------------------------------------------------------------------

def _tpu_generation_params():
    """Return (target x-block bytes, VMEM capacity bytes, tensorcores/chip)."""
    kind = ""
    try:
        kind = jax.devices()[0].device_kind.lower()
    except Exception:
        pass
    if "v7" in kind:
        return 8 * 1024 * 1024, 64 * 1024 * 1024, 2
    if "v6" in kind:
        return 5 * 1024 * 1024, 128 * 1024 * 1024, 1
    if "v5" in kind:
        return 2 * 1024 * 1024, 128 * 1024 * 1024, 1
    # Unknown generation: conservative middle ground.
    return 4 * 1024 * 1024, 64 * 1024 * 1024, 1


def _working_set_bytes(C, tile_t, in_itemsize, out_itemsize):
    """Estimated VMEM working set for one pipelined grid step."""
    elems = C * tile_t
    pipeline = 2 * elems * (in_itemsize + out_itemsize)   # double-buffered in+out
    body_f32 = 3 * elems * 4                              # x_f32 / centered / y temps
    params = 2 * 2 * C * 4                                # resident gamma/beta (f32)
    return pipeline + body_f32 + params


def _pick_tile_t(T, C, in_itemsize, out_itemsize, target_bytes, vmem_cap):
    """Largest lane-dense T tile: ~target_bytes per x block, capped so the full
    double-buffered working set (incl. f32 intermediates) fits in ~70% of VMEM."""
    budget = int(0.7 * vmem_cap)
    per_elem = 2 * (in_itemsize + out_itemsize) + 3 * 4
    max_elems = min(target_bytes // in_itemsize, budget // per_elem)
    max_t = max(128, (max_elems // max(1, C)) // 128 * 128)
    if T <= max_t:
        return T          # full-dim block: always layout-legal, single T step
    return max_t          # multiple of 128; ragged tail masked via cdiv grid


def _ensure_multicore_grid(B, T, tile_t, num_cores):
    """On multi-TC chips (v7x) guarantee enough parallel grid steps."""
    while B * pl.cdiv(T, tile_t) < num_cores and tile_t > 128:
        smaller = max(128, ((tile_t // 2) // 128) * 128)
        if smaller == tile_t:
            break
        tile_t = smaller
    return tile_t


# ---------------------------------------------------------------------------
# Kernels.
# ---------------------------------------------------------------------------

def _layernorm_nct_kernel(x_ref, gamma_ref, beta_ref, o_ref, *, eps):
    # x_ref: (1, C, tile_t) tile; gamma/beta: (C, 1) in f32 (VMEM-resident).
    x = x_ref[...].astype(jnp.float32)                        # (1, C, tT)
    g = gamma_ref[...][None]                                  # (1, C, 1)
    b = beta_ref[...][None]                                   # (1, C, 1)

    mean = jnp.mean(x, axis=-2, keepdims=True)                # reduce over C
    centered = x - mean
    var = jnp.mean(centered * centered, axis=-2, keepdims=True)
    inv = jax.lax.rsqrt(var + eps)                            # EUP slot

    # Apply affine without materializing a full-tile gamma*inv `scale` temp.
    o_ref[...] = ((centered * inv) * g + b).astype(o_ref.dtype)


def _layernorm_rows_kernel(x_ref, gamma_ref, beta_ref, o_ref, *, eps):
    # Small-T fallback: x_ref is (tile_r, C) with C on the lane axis.
    x = x_ref[...].astype(jnp.float32)
    mean = jnp.mean(x, axis=-1, keepdims=True)
    centered = x - mean
    var = jnp.mean(centered * centered, axis=-1, keepdims=True)
    inv = jax.lax.rsqrt(var + eps)
    o_ref[...] = ((centered * inv) * gamma_ref[...] + beta_ref[...]).astype(o_ref.dtype)


# ---------------------------------------------------------------------------
# Wrappers.
# ---------------------------------------------------------------------------

def _layer_norm_small_t(x, gamma_f32, beta_f32, eps, target_bytes):
    """Fallback for T < 128: normalize rows of the (B*T, C) view (C on lanes)."""
    B, C, T = x.shape
    rows = B * T
    xt = jnp.transpose(x, (0, 2, 1)).reshape(rows, C)

    itemsize = jnp.dtype(x.dtype).itemsize
    max_rows = max(8, (target_bytes // max(1, C * itemsize)) // 8 * 8)
    tile_r = rows if rows <= max_rows else max_rows

    kernel = functools.partial(_layernorm_rows_kernel, eps=eps)
    out = pl.pallas_call(
        kernel,
        out_shape=jax.ShapeDtypeStruct((rows, C), x.dtype),
        grid_spec=pltpu.PrefetchScalarGridSpec(
            num_scalar_prefetch=0,
            grid=(pl.cdiv(rows, tile_r),),
            in_specs=[
                pl.BlockSpec((tile_r, C), lambda r: (r, 0)),
                pl.BlockSpec((1, C), lambda r: (0, 0)),
                pl.BlockSpec((1, C), lambda r: (0, 0)),
            ],
            out_specs=pl.BlockSpec((tile_r, C), lambda r: (r, 0)),
        ),
        compiler_params=pltpu.CompilerParams(
            dimension_semantics=("parallel",),
        ),
    )(xt, gamma_f32.reshape(1, C), beta_f32.reshape(1, C))
    return jnp.transpose(out.reshape(B, T, C), (0, 2, 1))


def layer_norm_nct(x, gamma, beta, eps=1e-5, tile_t=None, vmem_limit_bytes=None):
    """x: (B, C, T). gamma, beta: (C,). Returns (B, C, T), layernorm over C."""
    B, C, T = x.shape
    target_bytes, vmem_cap, num_cores = _tpu_generation_params()
    in_itemsize = jnp.dtype(x.dtype).itemsize
    out_itemsize = in_itemsize

    # Hoist parameter casts out of the per-tile work.
    gamma_f32 = gamma.astype(jnp.float32)
    beta_f32 = beta.astype(jnp.float32)

    if tile_t is None and T < 128:
        # Lane-sparse T: use the C-on-lanes row layout instead.
        return _layer_norm_small_t(x, gamma_f32, beta_f32, eps, target_bytes)

    if tile_t is None:
        tile_t = _pick_tile_t(T, C, in_itemsize, out_itemsize, target_bytes, vmem_cap)
        tile_t = _ensure_multicore_grid(B, T, tile_t, num_cores)

    if vmem_limit_bytes is None:
        usage = _working_set_bytes(C, tile_t, in_itemsize, out_itemsize)
        vmem_limit_bytes = min(vmem_cap - 8 * 1024 * 1024,
                               max(32 * 1024 * 1024, usage + 8 * 1024 * 1024))

    kernel = functools.partial(_layernorm_nct_kernel, eps=eps)
    gamma_c1 = gamma_f32.reshape(C, 1)
    beta_c1 = beta_f32.reshape(C, 1)

    return pl.pallas_call(
        kernel,
        out_shape=jax.ShapeDtypeStruct((B, C, T), x.dtype),
        grid_spec=pltpu.PrefetchScalarGridSpec(
            num_scalar_prefetch=0,
            grid=(B, pl.cdiv(T, tile_t)),
            in_specs=[
                pl.BlockSpec((1, C, tile_t), lambda b, t: (b, 0, t)),
                pl.BlockSpec((C, 1), lambda b, t: (0, 0)),
                pl.BlockSpec((C, 1), lambda b, t: (0, 0)),
            ],
            out_specs=pl.BlockSpec((1, C, tile_t), lambda b, t: (b, 0, t)),
        ),
        compiler_params=pltpu.CompilerParams(
            dimension_semantics=("parallel", "parallel"),
            vmem_limit_bytes=int(vmem_limit_bytes),
        ),
    )(x, gamma_c1, beta_c1)


def _reference(x, gamma, beta, eps=1e-5):
    # Pure-JAX reference mirroring the PyTorch forward (transpose -> layer_norm
    # over channels -> transpose back).
    xt = jnp.transpose(x, (0, 2, 1)).astype(jnp.float32)
    mean = jnp.mean(xt, axis=-1, keepdims=True)
    var = jnp.mean((xt - mean) ** 2, axis=-1, keepdims=True)
    y = (xt - mean) / jnp.sqrt(var + eps) * gamma + beta
    return jnp.transpose(y, (0, 2, 1)).astype(x.dtype)


if __name__ == "__main__":
    # 1) Small-T path (B, C, T) = (2, 32, 16): exercises the C-on-lanes fallback.
    key = jax.random.PRNGKey(0)
    B, C, T = 2, 32, 16
    x = jax.random.normal(key, (B, C, T), dtype=jnp.float32)
    gamma = jnp.ones((C,), dtype=jnp.float32)   # matches torch.ones(channels)
    beta = jnp.zeros((C,), dtype=jnp.float32)   # matches torch.zeros(channels)
    out = jax.block_until_ready(layer_norm_nct(x, gamma, beta, eps=1e-5))
    ref = _reference(x, gamma, beta, eps=1e-5)
    assert out.shape == (B, C, T)
    assert jnp.allclose(out, ref, atol=1e-5, rtol=1e-5)

    # 2) Ragged T with a forced 128-wide tile: main path, cdiv grid + masked
    #    last tile, non-trivial gamma/beta.
    B2, C2, T2 = 2, 48, 200
    x2 = jax.random.normal(jax.random.PRNGKey(1), (B2, C2, T2), dtype=jnp.float32)
    g2 = jax.random.normal(jax.random.PRNGKey(2), (C2,), dtype=jnp.float32)
    b2 = jax.random.normal(jax.random.PRNGKey(3), (C2,), dtype=jnp.float32)
    out2 = jax.block_until_ready(layer_norm_nct(x2, g2, b2, eps=1e-5, tile_t=128))
    ref2 = _reference(x2, g2, b2, eps=1e-5)
    assert out2.shape == (B2, C2, T2)
    assert jnp.allclose(out2, ref2, atol=1e-4, rtol=1e-4)

    # 3) Auto tile selection on a T >= 128 shape (also exercises the v7x
    #    multi-core grid-occupancy halving when B*steps would be 1).
    B3, C3, T3 = 1, 32, 384
    x3 = jax.random.normal(jax.random.PRNGKey(4), (B3, C3, T3), dtype=jnp.float32)
    g3 = jax.random.normal(jax.random.PRNGKey(5), (C3,), dtype=jnp.float32)
    b3 = jax.random.normal(jax.random.PRNGKey(6), (C3,), dtype=jnp.float32)
    out3 = jax.block_until_ready(layer_norm_nct(x3, g3, b3, eps=1e-5))
    ref3 = _reference(x3, g3, b3, eps=1e-5)
    assert out3.shape == (B3, C3, T3)
    assert jnp.allclose(out3, ref3, atol=1e-4, rtol=1e-4)

    print("KERNEL_OK")
</pallas_src>

<mosaic_0001>
module attributes {stable_mosaic.version = 11 : i64} {
  func.func @_layernorm_rows_kernel(%arg0: i32, %arg1: memref<32x32xf32, #tpu.memory_space<vmem>>, %arg2: memref<1x32xf32, #tpu.memory_space<vmem>>, %arg3: memref<1x32xf32, #tpu.memory_space<vmem>>, %arg4: memref<32x32xf32, #tpu.memory_space<vmem>>) attributes {dimension_semantics = [#tpu.dimension_semantics<parallel>], iteration_bounds = array<i64: 1>, scalar_prefetch = 0 : i64, scratch_operands = 0 : i64, tpu.core_type = #tpu.core_type<tc>, window_params = [{transform_indices = @transform_0, window_bounds = array<i64: 32, 32>}, {pipeline_mode = #tpu.pipeline_mode<synchronous>, transform_indices = @transform_1, window_bounds = array<i64: 1, 32>}, {pipeline_mode = #tpu.pipeline_mode<synchronous>, transform_indices = @transform_2, window_bounds = array<i64: 1, 32>}, {transform_indices = @transform_3, window_bounds = array<i64: 32, 32>}]} {
    %c0 = arith.constant 0 : index
    %c0_0 = arith.constant 0 : index
    %0 = vector.load %arg1[%c0, %c0_0] : memref<32x32xf32, #tpu.memory_space<vmem>>, vector<32x32xf32>
    %cst = arith.constant dense<0.000000e+00> : vector<32xf32>
    %1 = vector.multi_reduction <add>, %0, %cst [1] : vector<32x32xf32> to vector<32xf32>
    %2 = vector.shape_cast %1 : vector<32xf32> to vector<32x1xf32>
    %cst_1 = arith.constant 3.200000e+01 : f32
    %3 = vector.broadcast %cst_1 : f32 to vector<32x1xf32>
    %4 = arith.divf %2, %3 : vector<32x1xf32>
    %5 = vector.broadcast %4 : vector<32x1xf32> to vector<32x32xf32>
    %6 = arith.subf %0, %5 : vector<32x32xf32>
    %7 = arith.mulf %6, %6 : vector<32x32xf32>
    %cst_2 = arith.constant dense<0.000000e+00> : vector<32xf32>
    %8 = vector.multi_reduction <add>, %7, %cst_2 [1] : vector<32x32xf32> to vector<32xf32>
    %9 = vector.shape_cast %8 : vector<32xf32> to vector<32x1xf32>
    %cst_3 = arith.constant 3.200000e+01 : f32
    %10 = vector.broadcast %cst_3 : f32 to vector<32x1xf32>
    %11 = arith.divf %9, %10 : vector<32x1xf32>
    %cst_4 = arith.constant 9.99999974E-6 : f32
    %12 = vector.broadcast %cst_4 : f32 to vector<32x1xf32>
    %13 = arith.addf %11, %12 : vector<32x1xf32>
    %14 = math.rsqrt %13 : vector<32x1xf32>
    %15 = vector.broadcast %14 : vector<32x1xf32> to vector<32x32xf32>
    %16 = arith.mulf %6, %15 : vector<32x32xf32>
    %c0_5 = arith.constant 0 : index
    %c0_6 = arith.constant 0 : index
    %17 = vector.load %arg2[%c0_5, %c0_6] : memref<1x32xf32, #tpu.memory_space<vmem>>, vector<1x32xf32>
    %18 = vector.broadcast %17 : vector<1x32xf32> to vector<32x32xf32>
    %19 = arith.mulf %16, %18 : vector<32x32xf32>
    %c0_7 = arith.constant 0 : index
    %c0_8 = arith.constant 0 : index
    %20 = vector.load %arg3[%c0_7, %c0_8] : memref<1x32xf32, #tpu.memory_space<vmem>>, vector<1x32xf32>
    %21 = vector.broadcast %20 : vector<1x32xf32> to vector<32x32xf32>
    %22 = arith.addf %19, %21 : vector<32x32xf32>
    %c0_9 = arith.constant 0 : index
    %c0_10 = arith.constant 0 : index
    %23 = vector.load %arg4[%c0_9, %c0_10] : memref<32x32xf32, #tpu.memory_space<vmem>>, vector<32x32xf32>
    tpu.vector_store %arg4[%c0_9, %c0_10], %22 {strides = array<i32>} : memref<32x32xf32, #tpu.memory_space<vmem>>, vector<32x32xf32>,
    return
  }
  func.func @transform_0(%arg0: i32) -> (i32, i32) {
    %c0_i32 = arith.constant 0 : i32
    %c0_i32_0 = arith.constant 0 : i32
    return %arg0, %c0_i32 : i32, i32
  }
  func.func @transform_1(%arg0: i32) -> (i32, i32) {
    %c0_i32 = arith.constant 0 : i32
    %c0_i32_0 = arith.constant 0 : i32
    %c0_i32_1 = arith.constant 0 : i32
    return %c0_i32, %c0_i32_0 : i32, i32
  }
  func.func @transform_2(%arg0: i32) -> (i32, i32) {
    %c0_i32 = arith.constant 0 : i32
    %c0_i32_0 = arith.constant 0 : i32
    %c0_i32_1 = arith.constant 0 : i32
    return %c0_i32, %c0_i32_0 : i32, i32
  }
  func.func @transform_3(%arg0: i32) -> (i32, i32) {
    %c0_i32 = arith.constant 0 : i32
    %c0_i32_0 = arith.constant 0 : i32
    return %arg0, %c0_i32 : i32, i32
  }
}

</mosaic_0001>

<llo_original>
// kernel: tpu_custom_call.1
$region0: #{tpu_custom_call.1}
  #allocation0 [shape = 'u32[]', space=smem, size = 0x4, offset = 0x4, fixed_abs, tag = 'smem constant byte address 0x4 - core index']
  #allocation1 [shape = 'u32[144,128]{1,0:T(1,128)}', space=vmem, size = 0x12000, scoped, tag = 'internal scratch']
  %s0 = inlined_call_operand.hbm [shape: f32[32,32], index: 0, kind: input, shape index: {}]
  %s1 = inlined_call_operand.vmem [shape: f32[1,32], index: 1, kind: input, shape index: {}]
  %s2 = inlined_call_operand.vmem [shape: f32[1,32], index: 2, kind: input, shape index: {}]
  %s3 = inlined_call_operand.hbm [shape: f32[32,32], index: 3, kind: output, shape index: {}]
  %s4 = sld [smem:[#allocation0]]
  $region26: #{tpu_custom_call.1} parent=0
    _
  %s6 = ssub.s32 1, %s4
  %s7 = scalar_select 0, %s6, %s4
  $region1: #{tpu_custom_call.1} parent=0
    #allocation2 [shape = 'u8[16384]{0}', space=vmem, size = 0x4000, scoped, tag = 'input window, operand 0, single buffered']
    #allocation3 [shape = 's32[1]{0}', space=sflag, size = 0x4, scoped, tag = 'scoped memory for tpu_custom_call.1']
    #allocation4 [shape = 's32[1]{0}', space=sflag, size = 0x4, scoped, tag = 'scoped memory for tpu_custom_call.1']
    #allocation5 [shape = 'u8[16384]{0}', space=vmem, size = 0x4000, scoped, tag = 'output window, operand 0, single buffered']
    %8 = vsyncpa [#allocation3], 0
    %9 = vsyncpa [#allocation4], 0
    // Predicated region
    $region2: #{tpu_custom_call.1} parent=1 // pred_check
      _
    $region3: #{tpu_custom_call.1} parent=1 // pred_check_branch
      %11 = sbr.rel (0) target = $region5
    $region4: #{tpu_custom_call.1} parent=1 // pred_region
      %s13 = ssub.s32 512, 512
      %14 = vsyncadd [#allocation3], %s13
      %s15 = sshll.u32 [#allocation2], 4
      %s16 = int_to_ptr.vmem [resolvable:$true] %s15
      %21 = dma.hbm_to_vmem [thread:$0]  %s0, 512, %s16, [#allocation3], 128, 128, 8
    $region5: #{tpu_custom_call.1} parent=1 // pred_fallthru
      _
    // Predicated region
    $region6: #{tpu_custom_call.1} parent=1 // pred_check
      _
    $region7: #{tpu_custom_call.1} parent=1 // pred_check_branch
      %23 = sbr.rel (0) target = $region9
    $region8: #{tpu_custom_call.1} parent=1 // pred_region
      _
    $region9: #{tpu_custom_call.1} parent=1 // pred_fallthru
      _
    // Predicated region
    $region10: #{tpu_custom_call.1} parent=1 // pred_check
      _
    $region11: #{tpu_custom_call.1} parent=1 // pred_check_branch
      %25 = sbr.rel (0) target = $region13
    $region12: #{tpu_custom_call.1} parent=1 // pred_region
      _
    $region13: #{tpu_custom_call.1} parent=1 // pred_fallthru
      _
    // Predicated region
    $region14: #{tpu_custom_call.1} parent=1 // pred_check
      _
    $region15: #{tpu_custom_call.1} parent=1 // pred_check_branch
      %27 = sbr.rel (0) target = $region17
    $region16: #{tpu_custom_call.1} parent=1 // pred_region
      %28 = dma.done [#allocation3], 512
    $region17: #{tpu_custom_call.1} parent=1 // pred_fallthru
      _
    %v29 = vld [vmem:[#allocation2] sm:$0xff]
    %v30 = vld [vmem:[#allocation2 + $0x8] sm:$0xff]
    %v31 = vld [vmem:[#allocation2 + $0x10] sm:$0xff]
    %v32 = vld [vmem:[#allocation2 + $0x18] sm:$0xff]
    %vm33 = vcmask 261120
    %v34 = vsel %vm33, %v29, 0.0
    %35 = vadd.xlane.f32.xlu0 %v34
    %v36 = vpop.xlane.xlu0 %35
    %v37 = vsel %vm33, %v30, 0.0
    %38 = vadd.xlane.f32.xlu0 %v37
    %v39 = vpop.xlane.xlu0 %38
    %v40 = vsel %vm33, %v31, 0.0
    %41 = vadd.xlane.f32.xlu0 %v40
    %v42 = vpop.xlane.xlu0 %41
    %v43 = vsel %vm33, %v32, 0.0
    %44 = vadd.xlane.f32.xlu0 %v43
    %v45 = vpop.xlane.xlu0 %44
    %v46 = vrcp.pop 32.0
    %v47 = vmul.f32 %v36, %v46
    %v48 = vmul.f32 %v39, %v46
    %v49 = vmul.f32 %v42, %v46
    %v50 = vmul.f32 %v45, %v46
    %v51 = vsub.f32 %v29, %v47
    %v52 = vsub.f32 %v30, %v48
    %v53 = vsub.f32 %v31, %v49
    %v54 = vsub.f32 %v32, %v50
    %v55 = vmul.f32 %v51, %v51
    %v56 = vmul.f32 %v52, %v52
    %v57 = vmul.f32 %v53, %v53
    %v58 = vmul.f32 %v54, %v54
    %v59 = vsel %vm33, %v55, 0.0
    %60 = vadd.xlane.f32.xlu0 %v59
    %v61 = vpop.xlane.xlu0 %60
    %v62 = vsel %vm33, %v56, 0.0
    %63 = vadd.xlane.f32.xlu0 %v62
    %v64 = vpop.xlane.xlu0 %63
    %v65 = vsel %vm33, %v57, 0.0
    %66 = vadd.xlane.f32.xlu0 %v65
    %v67 = vpop.xlane.xlu0 %66
    %v68 = vsel %vm33, %v58, 0.0
    %69 = vadd.xlane.f32.xlu0 %v68
    %v70 = vpop.xlane.xlu0 %69
    %v71 = vmul.f32 %v61, %v46
    %v72 = vmul.f32 %v64, %v46
    %v73 = vmul.f32 %v67, %v46
    %v74 = vmul.f32 %v70, %v46
    %v75 = vadd.f32 %v71, 1e-05
    %v76 = vadd.f32 %v72, 1e-05
    %v77 = vadd.f32 %v73, 1e-05
    %v78 = vadd.f32 %v74, 1e-05
    %v79 = vrsqrt.pop %v75
    %v80 = vrsqrt.pop %v76
    %v81 = vrsqrt.pop %v77
    %v82 = vrsqrt.pop %v78
    %v83 = vmul.f32 %v51, %v79
    %v84 = vmul.f32 %v52, %v80
    %v85 = vmul.f32 %v53, %v81
    %v86 = vmul.f32 %v54, %v82
    %v87 = vld [vmem:[%s1] sm:$0x1]
    %v89 = vlaneseq
    %v90 = vshrl.u32 %v89, 7
    %v91 = vsub.s32 0, %v90
    %v92 = vrot.slane %v87, %v91
    %v94 = vmul.f32 %v83, %v92
    %v95 = vmul.f32 %v84, %v92
    %v96 = vmul.f32 %v85, %v92
    %v97 = vmul.f32 %v86, %v92
    %v98 = vld [vmem:[%s2] sm:$0x1]
    %v100 = vlaneseq
    %v101 = vshrl.u32 %v100, 7
    %v102 = vsub.s32 0, %v101
    %v103 = vrot.slane %v98, %v102
    %v105 = vadd.f32 %v94, %v103
    %v106 = vadd.f32 %v95, %v103
    %v107 = vadd.f32 %v96, %v103
    %v108 = vadd.f32 %v97, %v103
    %109 = vst.msk [vmem:[#allocation5] sm:$0xff] %vm33, %v105
    %110 = vst.msk [vmem:[#allocation5 + $0x8] sm:$0xff] %vm33, %v106
    %111 = vst.msk [vmem:[#allocation5 + $0x10] sm:$0xff] %vm33, %v107
    %112 = vst.msk [vmem:[#allocation5 + $0x18] sm:$0xff] %vm33, %v108
    // Predicated region
    $region18: #{tpu_custom_call.1} parent=1 // pred_check
      _
    $region19: #{tpu_custom_call.1} parent=1 // pred_check_branch
      %114 = sbr.rel (0) target = $region21
    $region20: #{tpu_custom_call.1} parent=1 // pred_region
      %s116 = ssub.s32 512, 512
      %117 = vsyncadd [#allocation4], %s116
      %s118 = sshll.u32 [#allocation5], 4
      %s119 = int_to_ptr.vmem [resolvable:$true] %s118
      %124 = dma.vmem_to_hbm [thread:$0]  %s119, 512, %s3, [#allocation4], 128, 128, 8
    $region21: #{tpu_custom_call.1} parent=1 // pred_fallthru
      _
    // Predicated region
    $region22: #{tpu_custom_call.1} parent=1 // pred_check
      _
    $region23: #{tpu_custom_call.1} parent=1 // pred_check_branch
      %126 = sbr.rel (0) target = $region25
    $region24: #{tpu_custom_call.1} parent=1 // pred_region
      %127 = dma.done [#allocation4], 512
    $region25: #{tpu_custom_call.1} parent=1 // pred_fallthru
      _
    %128 = vsyncpa [#allocation3], 1
    %129 = vsyncpa [#allocation4], 1

</llo_original>
